<compile_context>
chip_gen: v7x
topology: tpu7x:2x2x1
jax: 0.10.0
libtpu: 0.0.40
codegen_flags: <defaults>
</compile_context>

<pallas_src>
import functools

import jax
import jax.numpy as jnp
from jax.experimental import pallas as pl
from jax.experimental.pallas import tpu as pltpu


def _kinematic_mask_kernel(idx_ref, x_any, o_any, zero_row, sems, *,
                           mask_count, copy_input):
    # idx_ref : (B * mask_count,) int32 in SMEM (scalar prefetch)
    # x_any   : (B, S, D) raw HBM ref (aliased to o_any on the primary path)
    # o_any   : (B, S, D) raw HBM ref (the output buffer)
    # zero_row: (1, D) VMEM scratch reused as the zero source for every row
    # sems    : (mask_count + 1,) DMA semaphores (last one for the bulk copy)
    b = pl.program_id(0)

    # Re-init every grid step (NOT gated on b == 0) so that core-parallel
    # sharding of the batch axis on v7x cannot skip the initialization.
    zero_row[...] = jnp.zeros_like(zero_row)

    if copy_input:
        # Fallback: bulk HBM->HBM copy of this batch element into the fresh
        # output buffer, then overwrite the masked rows below.
        bulk = pltpu.make_async_copy(x_any.at[b], o_any.at[b],
                                     sems.at[mask_count])
        bulk.start()
        bulk.wait()

    # Zero exactly the mask_count masked rows of this batch element.
    # Indices are distinct per batch element (module guarantees a set), so the
    # row DMAs target disjoint regions and can all be in flight at once.
    copies = []
    for m in range(mask_count):
        idx = idx_ref[b * mask_count + m]
        cp = pltpu.make_async_copy(
            zero_row,                              # (1, D) zeros in VMEM
            o_any.at[b, pl.ds(idx, 1), :],         # (1, D) row in HBM
            sems.at[m],
        )
        cp.start()
        copies.append(cp)
    for cp in copies:
        cp.wait()


def kinematic_mask(x, mask_indices, *, alias_input=True):
    """x: (B, S, D) float array; mask_indices: (B, mask_count) int32, distinct
    per batch element.  alias_input=True writes zeros in place into (a copy
    of / the donated buffer of) x; alias_input=False bulk-copies x first."""
    B, S, D = x.shape
    mask_count = mask_indices.shape[1]
    assert mask_count <= S, "Mask count must be <= sequence length"

    # Flatten indices -> 1-D SMEM table (1-D pads to next_pow2 bytes; 2-D
    # SMEM would pad each row to 128 words).
    flat_idx = mask_indices.reshape(-1).astype(jnp.int32)

    kernel = functools.partial(
        _kinematic_mask_kernel,
        mask_count=mask_count,
        copy_input=not alias_input,
    )

    return pl.pallas_call(
        kernel,
        out_shape=jax.ShapeDtypeStruct((B, S, D), x.dtype),
        grid_spec=pltpu.PrefetchScalarGridSpec(
            num_scalar_prefetch=1,
            grid=(B,),
            in_specs=[pl.BlockSpec(memory_space=pl.ANY)],   # raw HBM, manual DMA
            out_specs=pl.BlockSpec(memory_space=pl.ANY),
            scratch_shapes=[
                pltpu.VMEM((1, D), x.dtype),                 # zero row source
                pltpu.SemaphoreType.DMA((mask_count + 1,)),  # rows + bulk copy
            ],
        ),
        # Operands are (flat_idx, x): x is input index 1 -> alias to output 0.
        input_output_aliases=({1: 0} if alias_input else {}),
        compiler_params=pltpu.CompilerParams(
            dimension_semantics=("parallel",),  # batch elems independent (2 TCs on v7x)
        ),
    )(flat_idx, x)


def sample_mask_indices(key, batch_size, seq_len, mask_count):
    """Pick `mask_count` distinct indices per batch element (JAX analogue of
    the module's random.randint-until-unique loop)."""
    keys = jax.random.split(key, batch_size)
    idxs = jax.vmap(
        lambda k: jax.random.permutation(k, seq_len)[:mask_count]
    )(keys)
    return idxs.astype(jnp.int32)


if __name__ == "__main__":
    # Small shapes consistent with the module: (batch, seq_len, dim_in).
    B, S, D, MASK_COUNT = 2, 8, 128, 3
    assert MASK_COUNT <= S

    key = jax.random.PRNGKey(0)
    kx, kidx = jax.random.split(key)
    x = jax.random.normal(kx, (B, S, D), dtype=jnp.float32)
    mask_indices = sample_mask_indices(kidx, B, S, MASK_COUNT)

    # Plain-JAX reference of the module's forward semantics.
    mask = jnp.ones((B, S, 1), dtype=x.dtype)
    mask = mask.at[jnp.arange(B)[:, None], mask_indices, 0].set(0.0)
    ref = x * mask

    # Fallback (bulk-copy) path first, then the aliased in-place path.
    out_copy = jax.block_until_ready(
        kinematic_mask(x, mask_indices, alias_input=False))
    out_aliased = jax.block_until_ready(
        kinematic_mask(x, mask_indices, alias_input=True))

    assert jnp.allclose(out_copy, ref), "bulk-copy path mismatch vs reference"
    assert jnp.allclose(out_aliased, ref), "aliased path mismatch vs reference"

    print("KERNEL_OK")
</pallas_src>

<mosaic_0001>
module attributes {stable_mosaic.version = 11 : i64} {
  func.func @_kinematic_mask_kernel(%arg0: i32, %arg1: memref<6xi32, #tpu.memory_space<smem>>, %arg2: memref<2x8x128xf32, #tpu.memory_space<any>>, %arg3: memref<2x8x128xf32, #tpu.memory_space<any>>, %arg4: memref<1x128xf32, #tpu.memory_space<vmem>>, %arg5: memref<4x!tpu.dma_semaphore, #tpu.memory_space<semaphore_mem>>) attributes {dimension_semantics = [#tpu.dimension_semantics<parallel>], iteration_bounds = array<i64: 2>, scalar_prefetch = 1 : i64, scratch_operands = 2 : i64, tpu.core_type = #tpu.core_type<tc>, window_params = [{}, {}]} {
    %cst = arith.constant 0.000000e+00 : f32
    %0 = vector.broadcast %cst : f32 to vector<1x128xf32>
    %c0 = arith.constant 0 : index
    %c0_0 = arith.constant 0 : index
    %1 = vector.load %arg4[%c0, %c0_0] : memref<1x128xf32, #tpu.memory_space<vmem>>, vector<1x128xf32>
    tpu.vector_store %arg4[%c0, %c0_0], %0 {strides = array<i32>} : memref<1x128xf32, #tpu.memory_space<vmem>>, vector<1x128xf32>,
    %c3_i32 = arith.constant 3 : i32
    %c0_i32 = arith.constant 0 : i32
    %c0_i32_1 = arith.constant 0 : i32
    %2 = tpu.memref_slice %arg2[%arg0, %c0_i32, %c0_i32_1] : memref<2x8x128xf32, #tpu.memory_space<any>> -> memref<1x8x128xf32, #tpu.memory_space<any>>
    %3 = tpu.memref_squeeze %2 : memref<1x8x128xf32, #tpu.memory_space<any>> -> memref<8x128xf32, #tpu.memory_space<any>>
    %c0_i32_2 = arith.constant 0 : i32
    %c0_i32_3 = arith.constant 0 : i32
    %4 = tpu.memref_slice %arg3[%arg0, %c0_i32_2, %c0_i32_3] : memref<2x8x128xf32, #tpu.memory_space<any>> -> memref<1x8x128xf32, #tpu.memory_space<any>>
    %5 = tpu.memref_squeeze %4 : memref<1x8x128xf32, #tpu.memory_space<any>> -> memref<8x128xf32, #tpu.memory_space<any>>
    %6 = tpu.memref_slice %arg5[%c3_i32] : memref<4x!tpu.dma_semaphore, #tpu.memory_space<semaphore_mem>> -> memref<1x!tpu.dma_semaphore, #tpu.memory_space<semaphore_mem>>
    %7 = tpu.memref_squeeze %6 : memref<1x!tpu.dma_semaphore, #tpu.memory_space<semaphore_mem>> -> memref<!tpu.dma_semaphore, #tpu.memory_space<semaphore_mem>>
    tpu.enqueue_dma source(%3 : memref<8x128xf32, #tpu.memory_space<any>>) target(%5 : memref<8x128xf32, #tpu.memory_space<any>>) target_semaphore(%7 : memref<!tpu.dma_semaphore, #tpu.memory_space<semaphore_mem>>)
    %c3_i32_4 = arith.constant 3 : i32
    %c0_i32_5 = arith.constant 0 : i32
    %c0_i32_6 = arith.constant 0 : i32
    %8 = tpu.memref_slice %arg2[%arg0, %c0_i32_5, %c0_i32_6] : memref<2x8x128xf32, #tpu.memory_space<any>> -> memref<1x8x128xf32, #tpu.memory_space<any>>
    %9 = tpu.memref_squeeze %8 : memref<1x8x128xf32, #tpu.memory_space<any>> -> memref<8x128xf32, #tpu.memory_space<any>>
    %c0_i32_7 = arith.constant 0 : i32
    %c0_i32_8 = arith.constant 0 : i32
    %10 = tpu.memref_slice %arg3[%arg0, %c0_i32_7, %c0_i32_8] : memref<2x8x128xf32, #tpu.memory_space<any>> -> memref<1x8x128xf32, #tpu.memory_space<any>>
    %11 = tpu.memref_squeeze %10 : memref<1x8x128xf32, #tpu.memory_space<any>> -> memref<8x128xf32, #tpu.memory_space<any>>
    %12 = tpu.memref_slice %arg5[%c3_i32_4] : memref<4x!tpu.dma_semaphore, #tpu.memory_space<semaphore_mem>> -> memref<1x!tpu.dma_semaphore, #tpu.memory_space<semaphore_mem>>
    %13 = tpu.memref_squeeze %12 : memref<1x!tpu.dma_semaphore, #tpu.memory_space<semaphore_mem>> -> memref<!tpu.dma_semaphore, #tpu.memory_space<semaphore_mem>>
    tpu.wait_dma2 semaphore(%13 : memref<!tpu.dma_semaphore, #tpu.memory_space<semaphore_mem>>) src(%9 : memref<8x128xf32, #tpu.memory_space<any>>) dst(%11 : memref<8x128xf32, #tpu.memory_space<any>>)
    %c3_i32_9 = arith.constant 3 : i32
    %14 = arith.muli %arg0, %c3_i32_9 : i32
    %c0_i32_10 = arith.constant 0 : i32
    %15 = arith.addi %14, %c0_i32_10 : i32
    %16 = arith.index_cast %15 : i32 to index
    %17 = memref.load %arg1[%16] : memref<6xi32, #tpu.memory_space<smem>>
    %c0_i32_11 = arith.constant 0 : i32
    %c0_i32_12 = arith.constant 0 : i32
    %18 = tpu.memref_slice %arg3[%arg0, %17, %c0_i32_12] : memref<2x8x128xf32, #tpu.memory_space<any>> -> memref<1x1x128xf32, #tpu.memory_space<any>>
    %19 = tpu.memref_squeeze %18 : memref<1x1x128xf32, #tpu.memory_space<any>> -> memref<1x128xf32, #tpu.memory_space<any>>
    %20 = tpu.memref_slice %arg5[%c0_i32_11] : memref<4x!tpu.dma_semaphore, #tpu.memory_space<semaphore_mem>> -> memref<1x!tpu.dma_semaphore, #tpu.memory_space<semaphore_mem>>
    %21 = tpu.memref_squeeze %20 : memref<1x!tpu.dma_semaphore, #tpu.memory_space<semaphore_mem>> -> memref<!tpu.dma_semaphore, #tpu.memory_space<semaphore_mem>>
    tpu.enqueue_dma source(%arg4 : memref<1x128xf32, #tpu.memory_space<vmem>>) target(%19 : memref<1x128xf32, #tpu.memory_space<any>>) target_semaphore(%21 : memref<!tpu.dma_semaphore, #tpu.memory_space<semaphore_mem>>)
    %c3_i32_13 = arith.constant 3 : i32
    %22 = arith.muli %arg0, %c3_i32_13 : i32
    %c1_i32 = arith.constant 1 : i32
    %23 = arith.addi %22, %c1_i32 : i32
    %24 = arith.index_cast %23 : i32 to index
    %25 = memref.load %arg1[%24] : memref<6xi32, #tpu.memory_space<smem>>
    %c1_i32_14 = arith.constant 1 : i32
    %c0_i32_15 = arith.constant 0 : i32
    %26 = tpu.memref_slice %arg3[%arg0, %25, %c0_i32_15] : memref<2x8x128xf32, #tpu.memory_space<any>> -> memref<1x1x128xf32, #tpu.memory_space<any>>
    %27 = tpu.memref_squeeze %26 : memref<1x1x128xf32, #tpu.memory_space<any>> -> memref<1x128xf32, #tpu.memory_space<any>>
    %28 = tpu.memref_slice %arg5[%c1_i32_14] : memref<4x!tpu.dma_semaphore, #tpu.memory_space<semaphore_mem>> -> memref<1x!tpu.dma_semaphore, #tpu.memory_space<semaphore_mem>>
    %29 = tpu.memref_squeeze %28 : memref<1x!tpu.dma_semaphore, #tpu.memory_space<semaphore_mem>> -> memref<!tpu.dma_semaphore, #tpu.memory_space<semaphore_mem>>
    tpu.enqueue_dma source(%arg4 : memref<1x128xf32, #tpu.memory_space<vmem>>) target(%27 : memref<1x128xf32, #tpu.memory_space<any>>) target_semaphore(%29 : memref<!tpu.dma_semaphore, #tpu.memory_space<semaphore_mem>>)
    %c3_i32_16 = arith.constant 3 : i32
    %30 = arith.muli %arg0, %c3_i32_16 : i32
    %c2_i32 = arith.constant 2 : i32
    %31 = arith.addi %30, %c2_i32 : i32
    %32 = arith.index_cast %31 : i32 to index
    %33 = memref.load %arg1[%32] : memref<6xi32, #tpu.memory_space<smem>>
    %c2_i32_17 = arith.constant 2 : i32
    %c0_i32_18 = arith.constant 0 : i32
    %34 = tpu.memref_slice %arg3[%arg0, %33, %c0_i32_18] : memref<2x8x128xf32, #tpu.memory_space<any>> -> memref<1x1x128xf32, #tpu.memory_space<any>>
    %35 = tpu.memref_squeeze %34 : memref<1x1x128xf32, #tpu.memory_space<any>> -> memref<1x128xf32, #tpu.memory_space<any>>
    %36 = tpu.memref_slice %arg5[%c2_i32_17] : memref<4x!tpu.dma_semaphore, #tpu.memory_space<semaphore_mem>> -> memref<1x!tpu.dma_semaphore, #tpu.memory_space<semaphore_mem>>
    %37 = tpu.memref_squeeze %36 : memref<1x!tpu.dma_semaphore, #tpu.memory_space<semaphore_mem>> -> memref<!tpu.dma_semaphore, #tpu.memory_space<semaphore_mem>>
    tpu.enqueue_dma source(%arg4 : memref<1x128xf32, #tpu.memory_space<vmem>>) target(%35 : memref<1x128xf32, #tpu.memory_space<any>>) target_semaphore(%37 : memref<!tpu.dma_semaphore, #tpu.memory_space<semaphore_mem>>)
    %c0_i32_19 = arith.constant 0 : i32
    %c0_i32_20 = arith.constant 0 : i32
    %38 = tpu.memref_slice %arg3[%arg0, %17, %c0_i32_20] : memref<2x8x128xf32, #tpu.memory_space<any>> -> memref<1x1x128xf32, #tpu.memory_space<any>>
    %39 = tpu.memref_squeeze %38 : memref<1x1x128xf32, #tpu.memory_space<any>> -> memref<1x128xf32, #tpu.memory_space<any>>
    %40 = tpu.memref_slice %arg5[%c0_i32_19] : memref<4x!tpu.dma_semaphore, #tpu.memory_space<semaphore_mem>> -> memref<1x!tpu.dma_semaphore, #tpu.memory_space<semaphore_mem>>
    %41 = tpu.memref_squeeze %40 : memref<1x!tpu.dma_semaphore, #tpu.memory_space<semaphore_mem>> -> memref<!tpu.dma_semaphore, #tpu.memory_space<semaphore_mem>>
    tpu.wait_dma2 semaphore(%41 : memref<!tpu.dma_semaphore, #tpu.memory_space<semaphore_mem>>) src(%arg4 : memref<1x128xf32, #tpu.memory_space<vmem>>) dst(%39 : memref<1x128xf32, #tpu.memory_space<any>>)
    %c1_i32_21 = arith.constant 1 : i32
    %c0_i32_22 = arith.constant 0 : i32
    %42 = tpu.memref_slice %arg3[%arg0, %25, %c0_i32_22] : memref<2x8x128xf32, #tpu.memory_space<any>> -> memref<1x1x128xf32, #tpu.memory_space<any>>
    %43 = tpu.memref_squeeze %42 : memref<1x1x128xf32, #tpu.memory_space<any>> -> memref<1x128xf32, #tpu.memory_space<any>>
    %44 = tpu.memref_slice %arg5[%c1_i32_21] : memref<4x!tpu.dma_semaphore, #tpu.memory_space<semaphore_mem>> -> memref<1x!tpu.dma_semaphore, #tpu.memory_space<semaphore_mem>>
    %45 = tpu.memref_squeeze %44 : memref<1x!tpu.dma_semaphore, #tpu.memory_space<semaphore_mem>> -> memref<!tpu.dma_semaphore, #tpu.memory_space<semaphore_mem>>
    tpu.wait_dma2 semaphore(%45 : memref<!tpu.dma_semaphore, #tpu.memory_space<semaphore_mem>>) src(%arg4 : memref<1x128xf32, #tpu.memory_space<vmem>>) dst(%43 : memref<1x128xf32, #tpu.memory_space<any>>)
    %c2_i32_23 = arith.constant 2 : i32
    %c0_i32_24 = arith.constant 0 : i32
    %46 = tpu.memref_slice %arg3[%arg0, %33, %c0_i32_24] : memref<2x8x128xf32, #tpu.memory_space<any>> -> memref<1x1x128xf32, #tpu.memory_space<any>>
    %47 = tpu.memref_squeeze %46 : memref<1x1x128xf32, #tpu.memory_space<any>> -> memref<1x128xf32, #tpu.memory_space<any>>
    %48 = tpu.memref_slice %arg5[%c2_i32_23] : memref<4x!tpu.dma_semaphore, #tpu.memory_space<semaphore_mem>> -> memref<1x!tpu.dma_semaphore, #tpu.memory_space<semaphore_mem>>
    %49 = tpu.memref_squeeze %48 : memref<1x!tpu.dma_semaphore, #tpu.memory_space<semaphore_mem>> -> memref<!tpu.dma_semaphore, #tpu.memory_space<semaphore_mem>>
    tpu.wait_dma2 semaphore(%49 : memref<!tpu.dma_semaphore, #tpu.memory_space<semaphore_mem>>) src(%arg4 : memref<1x128xf32, #tpu.memory_space<vmem>>) dst(%47 : memref<1x128xf32, #tpu.memory_space<any>>)
    return
  }
}

</mosaic_0001>

<llo_original>
// kernel: tpu_custom_call.1
$region0: #{tpu_custom_call.1}
  #allocation0 [shape = 'u32[]', space=smem, size = 0x4, offset = 0x4, fixed_abs, tag = 'smem constant byte address 0x4 - core index']
  #allocation1 [shape = 'u32[144,128]{1,0:T(1,128)}', space=vmem, size = 0x12000, scoped, tag = 'internal scratch']
  #allocation2 [shape = 'f32[1,128]{1,0:T(1,128)}', space=vmem, size = 0x200, scoped, tag = 'scratch operand']
  #allocation3 [shape = 's32[4]{0}', space=sflag, size = 0x10, scoped, tag = 'scratch operand']
  #allocation4 [shape = 's32[1]{0}', space=sflag, size = 0x4, scoped, tag = 'scoped memory for tpu_custom_call.1']
  #allocation5 [shape = 'u8[512]{0}', space=smem, size = 0x200, scoped, tag = 'prefetched SMEM operand 0']
  #allocation6 [shape = 's32[]', space=sflag, size = 0x4, offset = 0, fixed_abs, tag = 'sflag constant byte address 0x0 - dummy sync flag']
  #allocation7 [shape = 'u32[0]{0}', space=smem, size = 0, offset = 0, fixed_abs, tag = 'smem constant byte address 0x0 - null']
  #allocation8 [shape = 's32[]', space=sflag, size = 0x4, offset = 0, fixed_abs, tag = 'sflag constant byte address 0x0 - dummy sync flag']
  #allocation9 [shape = 's32[]', space=sflag, size = 0x4, offset = 0, fixed_abs, tag = 'sflag constant byte address 0x0 - dummy sync flag']
  #allocation10 [shape = 'u32[]', space=smem, size = 0x4, offset = 0x44, fixed_abs, tag = 'smem constant byte address 0x44 - assertion arg 0']
  #allocation11 [shape = 'u32[]', space=smem, size = 0x4, offset = 0x48, fixed_abs, tag = 'smem constant byte address 0x48 - assertion arg 1']
  #allocation12 [shape = 's32[]', space=sflag, size = 0x4, offset = 0, fixed_abs, tag = 'sflag constant byte address 0x0 - dummy sync flag']
  #allocation13 [shape = 's32[]', space=sflag, size = 0x4, offset = 0, fixed_abs, tag = 'sflag constant byte address 0x0 - dummy sync flag']
  #allocation14 [shape = 's32[]', space=sflag, size = 0x4, offset = 0, fixed_abs, tag = 'sflag constant byte address 0x0 - dummy sync flag']
  #allocation15 [shape = 's32[]', space=sflag, size = 0x4, offset = 0, fixed_abs, tag = 'sflag constant byte address 0x0 - dummy sync flag']
  %s0 = inlined_call_operand.hbm [shape: s32[6], index: 0, kind: input, shape index: {}]
  %s1 = inlined_call_operand.hbm [shape: f32[2,8,128], index: 1, kind: input, shape index: {}]
  %s2 = inlined_call_operand.hbm [shape: f32[2,8,128], index: 2, kind: output, shape index: {}]
  %s3 = sld [smem:[#allocation0]]
  $region21: #{tpu_custom_call.1} parent=0
    _
  %s5 = ssub.s32 1, %s3
  %s6 = scalar_select 0, %s5, %s3
  %8 = dma.hbm_to_smem %s0, 16, [#allocation5], [#allocation4]
  %9 = dma.done [#allocation4], 16
  %10 = sfence
  loop: start=0, step=1, limit=2
  $region2: #{tpu_custom_call.1} parent=0 // loop_pre_header
    _
  $region3: #{tpu_custom_call.1} parent=0 // loop_header
    %s12 = sphi 0, %s16
    %p13 = scmp.ge.s32.totalorder %s12, 2
  $region4: #{tpu_custom_call.1} parent=0 // loop_header_branch
    %15 = sbr.rel (%p13) target = $region8
  $region5: #{tpu_custom_call.1} parent=0 // loop_body
    %s17 = sadd.s32 %s12, 1
    %18 = vst [vmem:[#allocation2] sm:$0x1] 0.0
    %s19 = smul.u32 %s12, 8
    %s20 = smul.addr %s19, 16
    %s21 = scalar_lea.hbm %s1, %s20
    %s22 = smul.addr %s19, 16
    %s23 = scalar_lea.hbm %s2, %s22
    %s24 = scalar_lea.sflag [#allocation3], 3
    %s26 = sshll.u32 1, 14
    %s27 = sxor.u32 4294967295, %s26
    %s30 = sshll.u32 3, 24
    %s31 = sxor.u32 4294967295, %s30
    %s32 = sand.u32 0, %s31
    %s34 = sor.u32 %s32, 0
    %37 = dma.general %s21, 128, %s23, %s24, [#allocation6], [#allocation7], %s34, 0
    %s38 = smul.u32 8, 1
    %s39 = sshll.u32 %s38, 4
    %40 = dma.done %s24, %s39
    %s41 = smul.u32 %s12, 3
    %s42 = sld [smem:[#allocation5 + %s41]]
    %s43 = sadd.s32 %s42, %s19
    %s44 = smul.addr %s43, 16
    %s45 = scalar_lea.hbm %s2, %s44
    // Predicated region
    $region9: #{tpu_custom_call.1} parent=5 // pred_check
      _
    $region10: #{tpu_custom_call.1} parent=5 // pred_check_branch
      %47 = sbr.rel target = $region12
    $region11: #{tpu_custom_call.1} parent=5 // pred_region
      %48 = sst [smem:[#allocation10]] [#allocation9]
      %49 = sst [smem:[#allocation11]] [#allocation8]
    $region12: #{tpu_custom_call.1} parent=5 // pred_fallthru
      _
    %51 = shalt.err (0)
    %s53 = sshll.u32 [#allocation2], 4
    %s54 = int_to_ptr.vmem [resolvable:$true] %s53
    %56 = dma.vmem_to_hbm [thread:$0]  %s54, 16, %s45, [#allocation3]
    %s57 = sadd.s32 %s41, 1
    %s58 = sld [smem:[#allocation5 + %s57]]
    %s59 = sadd.s32 %s58, %s19
    %s60 = smul.addr %s59, 16
    %s61 = scalar_lea.hbm %s2, %s60
    %s62 = scalar_lea.sflag [#allocation3], 1
    // Predicated region
    $region13: #{tpu_custom_call.1} parent=5 // pred_check
      _
    $region14: #{tpu_custom_call.1} parent=5 // pred_check_branch
      %64 = sbr.rel target = $region16
    $region15: #{tpu_custom_call.1} parent=5 // pred_region
      %65 = sst [smem:[#allocation10]] [#allocation13]
      %66 = sst [smem:[#allocation11]] [#allocation12]
    $region16: #{tpu_custom_call.1} parent=5 // pred_fallthru
      _
    %68 = shalt.err (0)
    %s70 = sshll.u32 [#allocation2], 4
    %s71 = int_to_ptr.vmem [resolvable:$true] %s70
    %73 = dma.vmem_to_hbm [thread:$0]  %s71, 16, %s61, %s62
    %s74 = sadd.s32 %s41, 2
    %s75 = sld [smem:[#allocation5 + %s74]]
    %s76 = sadd.s32 %s75, %s19
    %s77 = smul.addr %s76, 16
    %s78 = scalar_lea.hbm %s2, %s77
    %s79 = scalar_lea.sflag [#allocation3], 2
    // Predicated region
    $region17: #{tpu_custom_call.1} parent=5 // pred_check
      _
    $region18: #{tpu_custom_call.1} parent=5 // pred_check_branch
      %81 = sbr.rel target = $region20
    $region19: #{tpu_custom_call.1} parent=5 // pred_region
      %82 = sst [smem:[#allocation10]] [#allocation15]
      %83 = sst [smem:[#allocation11]] [#allocation14]
    $region20: #{tpu_custom_call.1} parent=5 // pred_fallthru
      _
    %85 = shalt.err (0)
    %s87 = sshll.u32 [#allocation2], 4
    %s88 = int_to_ptr.vmem [resolvable:$true] %s87
    %90 = dma.vmem_to_hbm [thread:$0]  %s88, 16, %s78, %s79
    %s91 = smul.u32 1, 1
    %s92 = sshll.u32 %s91, 4
    %93 = dma.done [#allocation3], %s92
    %s94 = sshll.u32 %s91, 4
    %95 = dma.done %s62, %s94
    %s96 = sshll.u32 %s91, 4
    %97 = dma.done %s79, %s96
  $region6: #{tpu_custom_call.1} parent=0 // loop_footer
    %s16 = sadd.s32 1, %s12
  $region7: #{tpu_custom_call.1} parent=0 // loop_footer_branch
    %11 = sbr.rel target = $region3
  $region8: #{tpu_custom_call.1} parent=0 // loop_exit
    _
  %98 = vsyncmov [#allocation3]
  %s99 = vpop.sfrf %98
  %p100 = scmp.eq.s32.totalorder %s99, 0
  %p101 = pneg %p100
  %103 = shalt.err (%p101)
  %s104 = scalar_lea.sflag [#allocation3], 1
  %105 = vsyncmov %s104
  %s106 = vpop.sfrf %105
  %p107 = scmp.eq.s32.totalorder %s106, 0
  %p108 = pneg %p107
  %110 = shalt.err (%p108)
  %s111 = scalar_lea.sflag [#allocation3], 2
  %112 = vsyncmov %s111
  %s113 = vpop.sfrf %112
  %p114 = scmp.eq.s32.totalorder %s113, 0
  %p115 = pneg %p114
  %117 = shalt.err (%p115)
  %s118 = scalar_lea.sflag [#allocation3], 3
  %119 = vsyncmov %s118
  %s120 = vpop.sfrf %119
  %p121 = scmp.eq.s32.totalorder %s120, 0
  %p122 = pneg %p121
  %124 = shalt.err (%p122)

</llo_original>
